<compile_context>
chip_gen: v7x
topology: tpu7x:2x2x1
jax: 0.10.0
libtpu: 0.0.40
codegen_flags: <defaults>
</compile_context>

<pallas_src>
import functools

import jax
import jax.numpy as jnp
from jax import lax
from jax.experimental import pallas as pl
from jax.experimental.pallas import tpu as pltpu


def _round_up(x, m):
    return ((x + m - 1) // m) * m


def _pick_tile(dim, desired, align):
    """Largest multiple of `align` that divides `dim` and is <= desired.
    Caller guarantees dim % align == 0, so `align` itself is always valid."""
    if dim <= desired:
        return dim
    t = (desired // align) * align
    while t >= align:
        if dim % t == 0:
            return t
        t -= align
    return min(dim, desired)  # unreachable when dim % align == 0


def _vmem_capacity_bytes():
    """Per-core VMEM capacity; conservative 64 MiB (v7x) fallback."""
    try:
        info = pltpu.get_tpu_info()
        cap = getattr(info, "vmem_capacity_bytes", None)
        if cap:
            return int(cap)
    except Exception:
        pass
    return 64 * 1024 * 1024


def _vmem_estimate(tm, tn, H, act_bytes, w_bytes):
    """Rough double-buffered working-set estimate for the chosen tiling."""
    total = 0
    total += 3 * 2 * tm * H * act_bytes        # h / emb / prev blocks (x2 buf)
    total += 2 * 2 * tn * 2 * H * w_bytes      # gate_w / up_w blocks  (x2 buf)
    total += 2 * H * tn * w_bytes              # down_w block          (x2 buf)
    total += 2 * tm * H * act_bytes            # output block          (x2 buf)
    total += tm * H * 4                        # f32 accumulator scratch
    total += 3 * tm * tn * 4                   # gate/up/inter f32 temporaries
    return total


# Contract the LAST axis of both operands: x[M, K] . W[N, K] -> [M, N]
# (x @ W.T with W kept in PyTorch [out, in] layout; no HBM transposes).
_DN = (((1,), (1,)), ((), ()))


def _mlp_kernel(h_ref, e_ref, p_ref, wg_ref, wu_ref, wd_ref, o_ref, acc_ref, *, H):
    # h/e/p: (tm, H)   wg/wu: (tn, 2H)   wd: (H, tn)
    # o: (tm, H)       acc (scratch, f32): (tm, H)
    n = pl.program_id(1)

    @pl.when(n == 0)
    def _init():
        acc_ref[...] = jnp.zeros_like(acc_ref)

    h = h_ref[...]
    e = e_ref[...]
    p = p_ref[...]

    # K-split of the [tn, 2H] weight blocks via static VMEM slices
    # (lane-aligned when H % 128 == 0) -- no wrapper-side HBM weight copies.
    gate = (lax.dot_general(h, wg_ref[:, :H], _DN, preferred_element_type=jnp.float32)
            + lax.dot_general(e, wg_ref[:, H:], _DN, preferred_element_type=jnp.float32))
    up = (lax.dot_general(h, wu_ref[:, :H], _DN, preferred_element_type=jnp.float32)
          + lax.dot_general(p, wu_ref[:, H:], _DN, preferred_element_type=jnp.float32))

    # SiLU(gate) * up in f32 on VPU/EUP.
    inter = (gate * jax.nn.sigmoid(gate)) * up

    # Partial down-projection for this I tile, accumulated over the I grid axis.
    acc_ref[...] += lax.dot_general(inter.astype(wd_ref.dtype), wd_ref[...],
                                    _DN, preferred_element_type=jnp.float32)

    @pl.when(n == pl.num_programs(1) - 1)
    def _finalize():
        o_ref[...] = acc_ref[...].astype(o_ref.dtype)


def xadaptive_mlp_pallas(hidden_states, inputs_embeds, prev_hidden_states,
                         gate_w, up_w, down_w, *, tm=None, tn=None,
                         interpret=False):
    """Pallas implementation of xAdaptiveMLP.forward (pretraining_tp == 1).

    hidden_states, inputs_embeds, prev_hidden_states: [B, S, H]
    gate_w, up_w: [I, 2H]   (PyTorch nn.Linear [out, in] layout)
    down_w:       [H, I]
    Returns: [B, S, H]
    """
    B, S, H = hidden_states.shape
    I = gate_w.shape[0]
    assert gate_w.shape == (I, 2 * H)
    assert up_w.shape == (I, 2 * H)
    assert down_w.shape == (H, I)

    M = B * S
    dtype = hidden_states.dtype
    act_bytes = jnp.dtype(dtype).itemsize
    w_bytes = jnp.dtype(gate_w.dtype).itemsize

    h2 = hidden_states.reshape(M, H)
    e2 = inputs_embeds.reshape(M, H)
    p2 = prev_hidden_states.reshape(M, H)

    # Rare path: pad I to a multiple of 128 so a lane-aligned tn always exists.
    # Zero-padded weight rows/cols contribute exactly zero to the output.
    I_pad = _round_up(I, 128)
    if I_pad != I:
        gate_w = jnp.pad(gate_w, ((0, I_pad - I), (0, 0)))
        up_w = jnp.pad(up_w, ((0, I_pad - I), (0, 0)))
        down_w = jnp.pad(down_w, ((0, 0), (0, I_pad - I)))

    # Generation-aware VMEM budget and tile defaults.
    vmem_cap = _vmem_capacity_bytes()
    vmem_limit = min(int(vmem_cap * 0.85), vmem_cap - (4 << 20))
    if vmem_cap >= 96 * 1024 * 1024:     # v5e / v6e: 128 MiB per core
        tm_d, tn_d = 512, 512
    else:                                 # v7x: 64 MiB per TensorCore
        tm_d, tn_d = 512, 256
    if tm is not None:
        tm_d = tm
    if tn is not None:
        tn_d = tn

    # Row-tile alignment: 8 sublanes for 32-bit, 16 for bf16, 32 for 8-bit.
    sub_align = max(8, 32 // act_bytes)
    tm_eff = min(tm_d, _round_up(M, sub_align))
    tm_eff = max(sub_align, (tm_eff // sub_align) * sub_align)
    tn_eff = _pick_tile(I_pad, max(128, tn_d), 128)

    # Fit the working set in VMEM: shrink tn first (keeps weight-reuse ~ tm),
    # then tm.
    while (_vmem_estimate(tm_eff, tn_eff, H, act_bytes, w_bytes) > vmem_limit
           and tn_eff > 128):
        tn_eff = _pick_tile(I_pad, max(128, tn_eff // 2), 128)
    while (_vmem_estimate(tm_eff, tn_eff, H, act_bytes, w_bytes) > vmem_limit
           and tm_eff > 2 * sub_align):
        tm_eff = max(sub_align, (tm_eff // 2 // sub_align) * sub_align)

    grid = (pl.cdiv(M, tm_eff), I_pad // tn_eff)

    kernel = functools.partial(_mlp_kernel, H=H)

    # Advisory cost: gate/up contract 2H each, down contracts I.
    flops = 10 * M * I * H
    bytes_accessed = (4 * M * H * act_bytes
                      + grid[0] * (2 * I_pad * 2 * H + I_pad * H) * w_bytes)

    out = pl.pallas_call(
        kernel,
        out_shape=jax.ShapeDtypeStruct((M, H), dtype),
        grid_spec=pltpu.PrefetchScalarGridSpec(
            num_scalar_prefetch=0,
            grid=grid,
            in_specs=[
                pl.BlockSpec((tm_eff, H), lambda i, n: (i, 0)),       # hidden
                pl.BlockSpec((tm_eff, H), lambda i, n: (i, 0)),       # inputs_embeds
                pl.BlockSpec((tm_eff, H), lambda i, n: (i, 0)),       # prev_hidden
                pl.BlockSpec((tn_eff, 2 * H), lambda i, n: (n, 0)),   # gate_w (whole)
                pl.BlockSpec((tn_eff, 2 * H), lambda i, n: (n, 0)),   # up_w   (whole)
                pl.BlockSpec((H, tn_eff), lambda i, n: (0, n)),       # down_w
            ],
            out_specs=pl.BlockSpec((tm_eff, H), lambda i, n: (i, 0)),
            scratch_shapes=[pltpu.VMEM((tm_eff, H), jnp.float32)],
        ),
        compiler_params=pltpu.CompilerParams(
            dimension_semantics=("parallel", "arbitrary"),
            vmem_limit_bytes=vmem_limit,
        ),
        cost_estimate=pl.CostEstimate(
            flops=int(flops),
            transcendentals=int(M * I),
            bytes_accessed=int(bytes_accessed),
        ),
        interpret=interpret,
    )(h2, e2, p2, gate_w, up_w, down_w)

    return out.reshape(B, S, H)


def _reference(hidden_states, inputs_embeds, prev_hidden_states,
               gate_w, up_w, down_w):
    xg = jnp.concatenate([hidden_states, inputs_embeds], axis=-1)
    xu = jnp.concatenate([hidden_states, prev_hidden_states], axis=-1)
    g = xg @ gate_w.T
    u = xu @ up_w.T
    return (jax.nn.silu(g) * u) @ down_w.T


if __name__ == "__main__":
    # Small shapes consistent with the module (hidden H, intermediate I > H).
    # H=128 keeps the in-kernel weight K-split lane-aligned; tn=128 with I=256
    # forces 2 I-grid steps so the accumulator init/finalize path is exercised.
    B, S, H, I = 2, 8, 128, 256
    key = jax.random.PRNGKey(0)
    k1, k2, k3, k4, k5, k6 = jax.random.split(key, 6)

    hidden_states = jax.random.normal(k1, (B, S, H), dtype=jnp.float32)
    inputs_embeds = jax.random.normal(k2, (B, S, H), dtype=jnp.float32)
    prev_hidden_states = jax.random.normal(k3, (B, S, H), dtype=jnp.float32)

    init_std = 0.02  # config.initializer_range
    gate_w = init_std * jax.random.normal(k4, (I, 2 * H), dtype=jnp.float32)
    up_w = init_std * jax.random.normal(k5, (I, 2 * H), dtype=jnp.float32)
    down_w = init_std * jax.random.normal(k6, (H, I), dtype=jnp.float32)

    out = xadaptive_mlp_pallas(hidden_states, inputs_embeds, prev_hidden_states,
                               gate_w, up_w, down_w, tn=128)
    out = jax.block_until_ready(out)

    ref = _reference(hidden_states, inputs_embeds, prev_hidden_states,
                     gate_w, up_w, down_w)
    assert out.shape == (B, S, H)
    assert jnp.allclose(out, ref, atol=1e-4, rtol=1e-4), \
        float(jnp.max(jnp.abs(out - ref)))

    print("KERNEL_OK")
</pallas_src>

<mosaic_0001>
module attributes {stable_mosaic.version = 11 : i64} {
  func.func @_mlp_kernel(%arg0: i32, %arg1: i32, %arg2: memref<16x128xf32, #tpu.memory_space<vmem>>, %arg3: memref<16x128xf32, #tpu.memory_space<vmem>>, %arg4: memref<16x128xf32, #tpu.memory_space<vmem>>, %arg5: memref<128x256xf32, #tpu.memory_space<vmem>>, %arg6: memref<128x256xf32, #tpu.memory_space<vmem>>, %arg7: memref<128x128xf32, #tpu.memory_space<vmem>>, %arg8: memref<16x128xf32, #tpu.memory_space<vmem>>, %arg9: memref<16x128xf32, #tpu.memory_space<vmem>>) attributes {dimension_semantics = [#tpu.dimension_semantics<parallel>, #tpu.dimension_semantics<arbitrary>], iteration_bounds = array<i64: 1, 2>, scalar_prefetch = 0 : i64, scratch_operands = 1 : i64, tpu.core_type = #tpu.core_type<tc>, window_params = [{transform_indices = @transform_0, window_bounds = array<i64: 16, 128>}, {transform_indices = @transform_1, window_bounds = array<i64: 16, 128>}, {transform_indices = @transform_2, window_bounds = array<i64: 16, 128>}, {transform_indices = @transform_3, window_bounds = array<i64: 128, 256>}, {transform_indices = @transform_4, window_bounds = array<i64: 128, 256>}, {transform_indices = @transform_5, window_bounds = array<i64: 128, 128>}, {transform_indices = @transform_6, window_bounds = array<i64: 16, 128>}]} {
    %c0_i32 = arith.constant 0 : i32
    %0 = arith.cmpi eq, %arg1, %c0_i32 : i32
    %1 = arith.extui %0 : i1 to i32
    %c0_i32_0 = arith.constant 0 : i32
    %2 = arith.cmpi ne, %1, %c0_i32_0 : i32
    scf.if %2 {
      %cst_25 = arith.constant 0.000000e+00 : f32
      %31 = vector.broadcast %cst_25 : f32 to vector<16x128xf32>
      %c0_26 = arith.constant 0 : index
      %c0_27 = arith.constant 0 : index
      %32 = vector.load %arg9[%c0_26, %c0_27] : memref<16x128xf32, #tpu.memory_space<vmem>>, vector<16x128xf32>
      tpu.vector_store %arg9[%c0_26, %c0_27], %31 {strides = array<i32>} : memref<16x128xf32, #tpu.memory_space<vmem>>, vector<16x128xf32>,
    } else {
    }
    %c0 = arith.constant 0 : index
    %c0_1 = arith.constant 0 : index
    %3 = vector.load %arg2[%c0, %c0_1] : memref<16x128xf32, #tpu.memory_space<vmem>>, vector<16x128xf32>
    %c0_2 = arith.constant 0 : index
    %c0_3 = arith.constant 0 : index
    %4 = vector.load %arg3[%c0_2, %c0_3] : memref<16x128xf32, #tpu.memory_space<vmem>>, vector<16x128xf32>
    %c0_4 = arith.constant 0 : index
    %c0_5 = arith.constant 0 : index
    %5 = vector.load %arg4[%c0_4, %c0_5] : memref<16x128xf32, #tpu.memory_space<vmem>>, vector<16x128xf32>
    %c0_6 = arith.constant 0 : index
    %c0_7 = arith.constant 0 : index
    %6 = vector.load %arg5[%c0_6, %c0_7] : memref<128x256xf32, #tpu.memory_space<vmem>>, vector<128x128xf32>
    %cst = arith.constant dense<0.000000e+00> : vector<16x128xf32>
    %7 = tpu.matmul %3, %6, %cst {dimension_numbers = #tpu.dot_dimension_numbers<[1], [1], [0], [0], [0, 0, 1, 0], [], []>} : vector<16x128xf32>, vector<128x128xf32>, vector<16x128xf32> -> vector<16x128xf32>
    %c0_8 = arith.constant 0 : index
    %c128 = arith.constant 128 : index
    %8 = vector.load %arg5[%c0_8, %c128] : memref<128x256xf32, #tpu.memory_space<vmem>>, vector<128x128xf32>
    %cst_9 = arith.constant dense<0.000000e+00> : vector<16x128xf32>
    %9 = tpu.matmul %4, %8, %cst_9 {dimension_numbers = #tpu.dot_dimension_numbers<[1], [1], [0], [0], [0, 0, 1, 0], [], []>} : vector<16x128xf32>, vector<128x128xf32>, vector<16x128xf32> -> vector<16x128xf32>
    %10 = arith.addf %7, %9 : vector<16x128xf32>
    %c0_10 = arith.constant 0 : index
    %c0_11 = arith.constant 0 : index
    %11 = vector.load %arg6[%c0_10, %c0_11] : memref<128x256xf32, #tpu.memory_space<vmem>>, vector<128x128xf32>
    %cst_12 = arith.constant dense<0.000000e+00> : vector<16x128xf32>
    %12 = tpu.matmul %3, %11, %cst_12 {dimension_numbers = #tpu.dot_dimension_numbers<[1], [1], [0], [0], [0, 0, 1, 0], [], []>} : vector<16x128xf32>, vector<128x128xf32>, vector<16x128xf32> -> vector<16x128xf32>
    %c0_13 = arith.constant 0 : index
    %c128_14 = arith.constant 128 : index
    %13 = vector.load %arg6[%c0_13, %c128_14] : memref<128x256xf32, #tpu.memory_space<vmem>>, vector<128x128xf32>
    %cst_15 = arith.constant dense<0.000000e+00> : vector<16x128xf32>
    %14 = tpu.matmul %5, %13, %cst_15 {dimension_numbers = #tpu.dot_dimension_numbers<[1], [1], [0], [0], [0, 0, 1, 0], [], []>} : vector<16x128xf32>, vector<128x128xf32>, vector<16x128xf32> -> vector<16x128xf32>
    %15 = arith.addf %12, %14 : vector<16x128xf32>
    %16 = arith.negf %10 : vector<16x128xf32>
    %17 = math.exp %16 : vector<16x128xf32>
    %cst_16 = arith.constant 1.000000e+00 : f32
    %18 = vector.broadcast %cst_16 : f32 to vector<16x128xf32>
    %19 = arith.addf %18, %17 : vector<16x128xf32>
    %20 = arith.divf %18, %19 : vector<16x128xf32>
    %21 = arith.mulf %10, %20 : vector<16x128xf32>
    %22 = arith.mulf %21, %15 : vector<16x128xf32>
    %c0_17 = arith.constant 0 : index
    %c0_18 = arith.constant 0 : index
    %23 = vector.load %arg9[%c0_17, %c0_18] : memref<16x128xf32, #tpu.memory_space<vmem>>, vector<16x128xf32>
    %c0_19 = arith.constant 0 : index
    %c0_20 = arith.constant 0 : index
    %24 = vector.load %arg7[%c0_19, %c0_20] : memref<128x128xf32, #tpu.memory_space<vmem>>, vector<128x128xf32>
    %cst_21 = arith.constant dense<0.000000e+00> : vector<16x128xf32>
    %25 = tpu.matmul %22, %24, %cst_21 {dimension_numbers = #tpu.dot_dimension_numbers<[1], [1], [0], [0], [0, 0, 1, 0], [], []>} : vector<16x128xf32>, vector<128x128xf32>, vector<16x128xf32> -> vector<16x128xf32>
    %26 = arith.addf %23, %25 : vector<16x128xf32>
    %c0_22 = arith.constant 0 : index
    %c0_23 = arith.constant 0 : index
    %27 = vector.load %arg9[%c0_22, %c0_23] : memref<16x128xf32, #tpu.memory_space<vmem>>, vector<16x128xf32>
    tpu.vector_store %arg9[%c0_22, %c0_23], %26 {strides = array<i32>} : memref<16x128xf32, #tpu.memory_space<vmem>>, vector<16x128xf32>,
    %c1_i32 = arith.constant 1 : i32
    %28 = arith.cmpi eq, %arg1, %c1_i32 : i32
    %29 = arith.extui %28 : i1 to i32
    %c0_i32_24 = arith.constant 0 : i32
    %30 = arith.cmpi ne, %29, %c0_i32_24 : i32
    scf.if %30 {
      %c0_25 = arith.constant 0 : index
      %c0_26 = arith.constant 0 : index
      %31 = vector.load %arg9[%c0_25, %c0_26] : memref<16x128xf32, #tpu.memory_space<vmem>>, vector<16x128xf32>
      %c0_27 = arith.constant 0 : index
      %c0_28 = arith.constant 0 : index
      %32 = vector.load %arg8[%c0_27, %c0_28] : memref<16x128xf32, #tpu.memory_space<vmem>>, vector<16x128xf32>
      tpu.vector_store %arg8[%c0_27, %c0_28], %31 {strides = array<i32>} : memref<16x128xf32, #tpu.memory_space<vmem>>, vector<16x128xf32>,
    } else {
    }
    return
  }
  func.func @transform_0(%arg0: i32, %arg1: i32) -> (i32, i32) {
    %c0_i32 = arith.constant 0 : i32
    %c0_i32_0 = arith.constant 0 : i32
    return %arg0, %c0_i32 : i32, i32
  }
  func.func @transform_1(%arg0: i32, %arg1: i32) -> (i32, i32) {
    %c0_i32 = arith.constant 0 : i32
    %c0_i32_0 = arith.constant 0 : i32
    return %arg0, %c0_i32 : i32, i32
  }
  func.func @transform_2(%arg0: i32, %arg1: i32) -> (i32, i32) {
    %c0_i32 = arith.constant 0 : i32
    %c0_i32_0 = arith.constant 0 : i32
    return %arg0, %c0_i32 : i32, i32
  }
  func.func @transform_3(%arg0: i32, %arg1: i32) -> (i32, i32) {
    %c0_i32 = arith.constant 0 : i32
    %c0_i32_0 = arith.constant 0 : i32
    return %arg1, %c0_i32 : i32, i32
  }
  func.func @transform_4(%arg0: i32, %arg1: i32) -> (i32, i32) {
    %c0_i32 = arith.constant 0 : i32
    %c0_i32_0 = arith.constant 0 : i32
    return %arg1, %c0_i32 : i32, i32
  }
  func.func @transform_5(%arg0: i32, %arg1: i32) -> (i32, i32) {
    %c0_i32 = arith.constant 0 : i32
    %c0_i32_0 = arith.constant 0 : i32
    return %c0_i32, %arg1 : i32, i32
  }
  func.func @transform_6(%arg0: i32, %arg1: i32) -> (i32, i32) {
    %c0_i32 = arith.constant 0 : i32
    %c0_i32_0 = arith.constant 0 : i32
    return %arg0, %c0_i32 : i32, i32
  }
}

</mosaic_0001>

<llo_original>
// kernel: tpu_custom_call.1
$region0: #{tpu_custom_call.1}
  #allocation0 [shape = 'u32[]', space=smem, size = 0x4, offset = 0x4, fixed_abs, tag = 'smem constant byte address 0x4 - core index']
  #allocation1 [shape = 'u32[144,128]{1,0:T(1,128)}', space=vmem, size = 0x12000, scoped, tag = 'internal scratch']
  #allocation2 [shape = 'f32[16,128]{1,0:T(8,128)}', space=vmem, size = 0x2000, scoped, tag = 'scratch operand']
  %s0 = inlined_call_operand.hbm [shape: f32[16,128], index: 0, kind: input, shape index: {}]
  %s1 = inlined_call_operand.hbm [shape: f32[16,128], index: 1, kind: input, shape index: {}]
  %s2 = inlined_call_operand.hbm [shape: f32[16,128], index: 2, kind: input, shape index: {}]
  %s3 = inlined_call_operand.hbm [shape: f32[256,256], index: 3, kind: input, shape index: {}]
  %s4 = inlined_call_operand.hbm [shape: f32[256,256], index: 4, kind: input, shape index: {}]
  %s5 = inlined_call_operand.hbm [shape: f32[128,256], index: 5, kind: input, shape index: {}]
  %s6 = inlined_call_operand.hbm [shape: f32[16,128], index: 6, kind: output, shape index: {}]
  %s7 = sld [smem:[#allocation0]]
  $region89: #{tpu_custom_call.1} parent=0
    _
  %s9 = ssub.s32 1, %s7
  %s10 = scalar_select 0, %s9, %s7
  $region1: #{tpu_custom_call.1} parent=0
    #allocation3 [shape = 'u8[8192]{0}', space=vmem, size = 0x2000, scoped, tag = 'input window, operand 0, single buffered']
    #allocation4 [shape = 's32[2]{0}', space=sflag, size = 0x8, scoped, tag = 'scoped memory for tpu_custom_call.1']
    #allocation5 [shape = 's32[2]{0}', space=sflag, size = 0x8, scoped, tag = 'scoped memory for tpu_custom_call.1']
    #allocation6 [shape = 'u8[8192]{0}', space=vmem, size = 0x2000, scoped, tag = 'input window, operand 1, single buffered']
    #allocation7 [shape = 's32[1]{0}', space=sflag, size = 0x4, scoped, tag = 'scoped memory for tpu_custom_call.1']
    #allocation8 [shape = 'u8[8192]{0}', space=vmem, size = 0x2000, scoped, tag = 'input window, operand 2, single buffered']
    #allocation9 [shape = 'u8[262144]{0}', space=vmem, size = 0x40000, scoped, tag = 'input window, operand 3']
    #allocation10 [shape = 's32[2]{0}', space=sflag, size = 0x8, scoped, tag = 'scoped memory for tpu_custom_call.1']
    #allocation11 [shape = 'u8[262144]{0}', space=vmem, size = 0x40000, scoped, tag = 'input window, operand 4']
    #allocation12 [shape = 'u8[131072]{0}', space=vmem, size = 0x20000, scoped, tag = 'input window, operand 5']
    #allocation13 [shape = 's32[2]{0}', space=sflag, size = 0x8, scoped, tag = 'scoped memory for tpu_custom_call.1']
    #allocation14 [shape = 'u8[8192]{0}', space=vmem, size = 0x2000, scoped, tag = 'output window, operand 0, single buffered']
    %11 = vsyncpa [#allocation4], 0
    %12 = vsyncpa [#allocation7], 0
    %13 = vsyncpa [#allocation10], 0
    %s14 = scalar_lea.sflag [#allocation10], 1
    %15 = vsyncpa %s14, 0
    %16 = vsyncpa [#allocation13], 0
    %s17 = scalar_lea.sflag [#allocation13], 1
    %18 = vsyncpa %s17, 0
    %19 = vsyncpa [#allocation5], 0
    loop: start=0, step=1, limit=4
    $region2: #{tpu_custom_call.1} parent=1 // loop_pre_header
      _
    $region3: #{tpu_custom_call.1} parent=1 // loop_header
      %s21 = sphi 0, %s25
      %p22 = scmp.ge.s32.totalorder %s21, 4
      %s28 = sphi 0, %s40
      %s29 = sphi 0, %s36
      %s30 = sphi 0, %s28
      %s31 = sphi 0, %s29
      %s32 = sphi 0, %s30
      %s33 = sphi 0, %s31
      %s43 = sphi 0, %s45
      %s46 = sphi 0, %s43
      %s47 = sphi 0, %s46
      %s63 = sphi 0, %s47
      %s69 = sphi 0, %s71
      %s72 = sphi 0, %s69
      %s73 = sphi 0, %s72
      %s89 = sphi 0, %s73
      %s95 = sphi 0, %s97
      %s98 = sphi 0, %s95
      %s99 = sphi 0, %s98
      %s115 = sphi 0, %s99
      %s121 = sphi 0, %s123
      %s124 = sphi 0, %s121
      %s125 = sphi 0, %s124
      %s141 = sphi 0, %s125
      %s147 = sphi 0, %s149
      %s150 = sphi 0, %s147
      %s151 = sphi 0, %s150
      %s167 = sphi 0, %s151
      %s173 = sphi 0, %s175
      %s176 = sphi 0, %s173
      %s177 = sphi 0, %s176
      %s193 = sphi 0, %s177
      %s199 = sphi 0, %s201
      %s202 = sphi 0, %s199
      %s203 = sphi 0, %s202
      %s219 = sphi 0, %s203
    $region4: #{tpu_custom_call.1} parent=1 // loop_header_branch
      %24 = sbr.rel (%p22) target = $region8
    $region5: #{tpu_custom_call.1} parent=1 // loop_body
      %s26 = ssub.s32 %s21, 1
      %s27 = ssub.s32 %s21, 2
      %s34 = sadd.s32 1, %s29
      %p35 = scmp.ge.s32.totalorder %s34, 2
      %s36 = scalar_select %p35, 0, %s34
      %s37 = sadd.s32 1, %s28
      %s38 = scalar_select %p35, %s37, %s28
      %p39 = scmp.ge.s32.totalorder %s38, 1
      %s40 = scalar_select %p39, 0, %s38
      %s41 = ssub.s32 %s28, %s40
      %p42 = scmp.eq.s32.totalorder %s41, 0
      %s44 = sadd.s32 %s43, 1
      %s45 = scalar_select %p42, %s43, %s44
      %p48 = pneg %p42
      %p49 = scmp.eq.s32.totalorder %s21, 1
      %p50 = por %p48, %p49
      %p51 = scmp.ne.s32.totalorder %s43, %s46
      %p52 = scmp.eq.s32.totalorder %s21, 0
      %p53 = por %p51, %p52
      %p54 = scmp.ne.s32.totalorder %s43, %s46
      %p55 = scmp.eq.s32.totalorder %s26, 1
      %p56 = por %p54, %p55
      %p57 = scmp.ne.s32.totalorder %s46, %s47
      %p58 = scmp.eq.s32.totalorder %s26, 0
      %p59 = por %p57, %p58
      %p60 = scmp.ne.s32.totalorder %s46, %s47
      %p61 = scmp.eq.s32.totalorder %s27, 1
      %p62 = por %p60, %p61
      %p64 = scmp.ne.s32.totalorder %s47, %s63
      %p65 = scmp.eq.s32.totalorder %s27, 0
      %p66 = por %p64, %p65
      %s67 = ssub.s32 %s28, %s40
      %p68 = scmp.eq.s32.totalorder %s67, 0
      %s70 = sadd.s32 %s69, 1
      %s71 = scalar_select %p68, %s69, %s70
      %p74 = pneg %p68
      %p75 = scmp.eq.s32.totalorder %s21, 1
      %p76 = por %p74, %p75
      %p77 = scmp.ne.s32.totalorder %s69, %s72
      %p78 = scmp.eq.s32.totalorder %s21, 0
      %p79 = por %p77, %p78
      %p80 = scmp.ne.s32.totalorder %s69, %s72
      %p81 = scmp.eq.s32.totalorder %s26, 1
      %p82 = por %p80, %p81
      %p83 = scmp.ne.s32.totalorder %s72, %s73
      %p84 = scmp.eq.s32.totalorder %s26, 0
      %p85 = por %p83, %p84
      %p86 = scmp.ne.s32.totalorder %s72, %s73
      %p87 = scmp.eq.s32.totalorder %s27, 1
      %p88 = por %p86, %p87
      %p90 = scmp.ne.s32.totalorder %s73, %s89
      %p91 = scmp.eq.s32.totalorder %s27, 0
      %p92 = por %p90, %p91
      %s93 = ssub.s32 %s28, %s40
      %p94 = scmp.eq.s32.totalorder %s93, 0
      %s96 = sadd.s32 %s95, 1
      %s97 = scalar_select %p94, %s95, %s96
      %p100 = pneg %p94
      %p101 = scmp.eq.s32.totalorder %s21, 1
      %p102 = por %p100, %p101
      %p103 = scmp.ne.s32.totalorder %s95, %s98
      %p104 = scmp.eq.s32.totalorder %s21, 0
      %p105 = por %p103, %p104
      %p106 = scmp.ne.s32.totalorder %s95, %s98
      %p107 = scmp.eq.s32.totalorder %s26, 1
      %p108 = por %p106, %p107
      %p109 = scmp.ne.s32.totalorder %s98, %s99
      %p110 = scmp.eq.s32.totalorder %s26, 0
      %p111 = por %p109, %p110
      %p112 = scmp.ne.s32.totalorder %s98, %s99
      %p113 = scmp.eq.s32.totalorder %s27, 1
      %p114 = por %p112, %p113
      %p116 = scmp.ne.s32.totalorder %s99, %s115
      %p117 = scmp.eq.s32.totalorder %s27, 0
      %p118 = por %p116, %p117
      %s119 = ssub.s32 %s29, %s36
      %p120 = scmp.eq.s32.totalorder %s119, 0
      %s122 = sadd.s32 %s121, 1
      %s123 = scalar_select %p120, %s121, %s122
      %p126 = pneg %p120
      %p127 = scmp.eq.s32.totalorder %s21, 1
      %p128 = por %p126, %p127
      %p129 = scmp.ne.s32.totalorder %s121, %s124
      %p130 = scmp.eq.s32.totalorder %s21, 0
      %p131 = por %p129, %p130
      %p132 = scmp.ne.s32.totalorder %s121, %s124
      %p133 = scmp.eq.s32.totalorder %s26, 1
      %p134 = por %p132, %p133
      %p135 = scmp.ne.s32.totalorder %s124, %s125
      %p136 = scmp.eq.s32.totalorder %s26, 0
      %p137 = por %p135, %p136
      %p138 = scmp.ne.s32.totalorder %s124, %s125
      %p139 = scmp.eq.s32.totalorder %s27, 1
      %p140 = por %p138, %p139
      %p142 = scmp.ne.s32.totalorder %s125, %s141
      %p143 = scmp.eq.s32.totalorder %s27, 0
      %p144 = por %p142, %p143
      %s145 = ssub.s32 %s29, %s36
      %p146 = scmp.eq.s32.totalorder %s145, 0
      %s148 = sadd.s32 %s147, 1
      %s149 = scalar_select %p146, %s147, %s148
      %p152 = pneg %p146
      %p153 = scmp.eq.s32.totalorder %s21, 1
      %p154 = por %p152, %p153
      %p155 = scmp.ne.s32.totalorder %s147, %s150
      %p156 = scmp.eq.s32.totalorder %s21, 0
      %p157 = por %p155, %p156
      %p158 = scmp.ne.s32.totalorder %s147, %s150
      %p159 = scmp.eq.s32.totalorder %s26, 1
      %p160 = por %p158, %p159
      %p161 = scmp.ne.s32.totalorder %s150, %s151
      %p162 = scmp.eq.s32.totalorder %s26, 0
      %p163 = por %p161, %p162
      %p164 = scmp.ne.s32.totalorder %s150, %s151
      %p165 = scmp.eq.s32.totalorder %s27, 1
      %p166 = por %p164, %p165
      %p168 = scmp.ne.s32.totalorder %s151, %s167
      %p169 = scmp.eq.s32.totalorder %s27, 0
      %p170 = por %p168, %p169
      %s171 = ssub.s32 %s29, %s36
      %p172 = scmp.eq.s32.totalorder %s171, 0
      %s174 = sadd.s32 %s173, 1
      %s175 = scalar_select %p172, %s173, %s174
      %p178 = pneg %p172
      %p179 = scmp.eq.s32.totalorder %s21, 1
      %p180 = por %p178, %p179
      %p181 = scmp.ne.s32.totalorder %s173, %s176
      %p182 = scmp.eq.s32.totalorder %s21, 0
      %p183 = por %p181, %p182
      %p184 = scmp.ne.s32.totalorder %s173, %s176
      %p185 = scmp.eq.s32.totalorder %s26, 1
      %p186 = por %p184, %p185
      %p187 = scmp.ne.s32.totalorder %s176, %s177
      %p188 = scmp.eq.s32.totalorder %s26, 0
      %p189 = por %p187, %p188
      %p190 = scmp.ne.s32.totalorder %s176, %s177
      %p191 = scmp.eq.s32.totalorder %s27, 1
      %p192 = por %p190, %p191
      %p194 = scmp.ne.s32.totalorder %s177, %s193
      %p195 = scmp.eq.s32.totalorder %s27, 0
      %p196 = por %p194, %p195
      %s197 = ssub.s32 %s28, %s40
      %p198 = scmp.eq.s32.totalorder %s197, 0
      %s200 = sadd.s32 %s199, 1
      %s201 = scalar_select %p198, %s199, %s200
      %p204 = pneg %p198
      %p205 = scmp.eq.s32.totalorder %s21, 1
      %p206 = por %p204, %p205
      %p207 = scmp.ne.s32.totalorder %s199, %s202
      %p208 = scmp.eq.s32.totalorder %s21, 0
      %p209 = por %p207, %p208
      %p210 = scmp.ne.s32.totalorder %s199, %s202
      %p211 = scmp.eq.s32.totalorder %s26, 1
      %p212 = por %p210, %p211
      %p213 = scmp.ne.s32.totalorder %s202, %s203
      %p214 = scmp.eq.s32.totalorder %s26, 0
      %p215 = por %p213, %p214
      %p216 = scmp.ne.s32.totalorder %s202, %s203
      %p217 = scmp.eq.s32.totalorder %s27, 1
      %p218 = por %p216, %p217
      %p220 = scmp.ne.s32.totalorder %s203, %s219
      %p221 = scmp.eq.s32.totalorder %s27, 0
      %p222 = por %p220, %p221
      %p223 = scmp.le.s32.totalorder 1, %s21
      %p224 = scmp.lt.s32.totalorder %s21, 3
      %p225 = pnand %p223, %p224
      %p226 = pneg %p225
      // Predicated region
      $region9: #{tpu_custom_call.1} parent=5 // pred_check
        _
      $region10: #{tpu_custom_call.1} parent=5 // pred_check_branch
        %228 = sbr.rel (%p225) target = $region12
      $region11: #{tpu_custom_call.1} parent=5 // pred_region
        %s229 = ssub.s32 %s21, 1
        // Predicated region
        $region13: #{tpu_custom_call.1} parent=11 // pred_check
          %p230 = pneg %p59
        $region14: #{tpu_custom_call.1} parent=11 // pred_check_branch
          %232 = sbr.rel (%p230) target = $region16
        $region15: #{tpu_custom_call.1} parent=11 // pred_region
          %s233 = smul.u32 2, %s30
          %s235 = ssub.s32 256, 256
          %236 = vsyncadd [#allocation4], %s235
          %s237 = smul.addr %s233, 128
          %s238 = scalar_lea.hbm %s0, %s237
          %s239 = sshll.u32 [#allocation3], 4
          %s240 = int_to_ptr.vmem [resolvable:$true] %s239
          %245 = dma.hbm_to_vmem [thread:$0]  %s238, 256, %s240, [#allocation4], 128, 128, 8
        $region16: #{tpu_custom_call.1} parent=11 // pred_fallthru
          _
        // Predicated region
        $region17: #{tpu_custom_call.1} parent=11 // pred_check
          %p246 = pneg %p85
        $region18: #{tpu_custom_call.1} parent=11 // pred_check_branch
          %248 = sbr.rel (%p246) target = $region20
        $region19: #{tpu_custom_call.1} parent=11 // pred_region
          %s249 = smul.u32 2, %s30
          %s251 = ssub.s32 256, 256
          %252 = vsyncadd [#allocation7], %s251
          %s253 = smul.addr %s249, 128
          %s254 = scalar_lea.hbm %s1, %s253
          %s255 = sshll.u32 [#allocation6], 4
          %s256 = int_to_ptr.vmem [resolvable:$true] %s255
          %261 = dma.hbm_to_vmem [thread:$0]  %s254, 256, %s256, [#allocation7], 128, 128, 8
        $region20: #{tpu_custom_call.1} parent=11 // pred_fallthru
          _
        // Predicated region
        $region21: #{tpu_custom_call.1} parent=11 // pred_check
          %p262 = pneg %p111
        $region22: #{tpu_custom_call.1} parent=11 // pred_check_branch
          %264 = sbr.rel (%p262) target = $region24
        $region23: #{tpu_custom_call.1} parent=11 // pred_region
          %s265 = smul.u32 2, %s30
          %s267 = ssub.s32 256, 256
          %268 = vsyncadd [#allocation7], %s267
          %s269 = smul.addr %s265, 128
          %s270 = scalar_lea.hbm %s2, %s269
          %s271 = sshll.u32 [#allocation8], 4
          %s272 = int_to_ptr.vmem [resolvable:$true] %s271
          %277 = dma.hbm_to_vmem [thread:$0]  %s270, 256, %s272, [#allocation7], 128, 128, 8
        $region24: #{tpu_custom_call.1} parent=11 // pred_fallthru
          _
      $region12: #{tpu_custom_call.1} parent=5 // pred_fallthru
        _
      %p278 = scmp.lt.s32.totalorder %s21, 2
      // Predicated region
      $region25: #{tpu_custom_call.1} parent=5 // pred_check
        %p279 = pneg %p278
      $region26: #{tpu_custom_call.1} parent=5 // pred_check_branch
        %281 = sbr.rel (%p279) target = $region28
      $region27: #{tpu_custom_call.1} parent=5 // pred_region
        // Predicated region
        $region29: #{tpu_custom_call.1} parent=27 // pred_check
          %p282 = pneg %p131
        $region30: #{tpu_custom_call.1} parent=27 // pred_check_branch
          %284 = sbr.rel (%p282) target = $region32
        $region31: #{tpu_custom_call.1} parent=27 // pred_region
          %s285 = sand.u32 %s21, 1
          %s286 = scalar_lea.sflag [#allocation10], %s285
          %s287 = sand.u32 %s121, 1
          %s288 = smul.addr %s287, 256
          %s289 = scalar_lea.vmem [#allocation9], %s288
          %s290 = smul.u32 16, %s29
          %s292 = ssub.s32 4096, 4096
          %293 = vsyncadd %s286, %s292
          %s294 = smul.addr %s290, 2
          %s295 = smul.addr %s294, 128
          %s296 = scalar_lea.hbm %s3, %s295
          %s297 = sshll.u32 %s289, 4
          %s298 = int_to_ptr.vmem [resolvable:$true] %s297
          %303 = dma.hbm_to_vmem [thread:$0]  %s296, 4096, %s298, %s286, 256, 256, 16
        $region32: #{tpu_custom_call.1} parent=27 // pred_fallthru
          _
        // Predicated region
        $region33: #{tpu_custom_call.1} parent=27 // pred_check
          %p304 = pneg %p157
        $region34: #{tpu_custom_call.1} parent=27 // pred_check_branch
          %306 = sbr.rel (%p304) target = $region36
        $region35: #{tpu_custom_call.1} parent=27 // pred_region
          %s307 = sand.u32 %s21, 1
          %s308 = scalar_lea.sflag [#allocation10], %s307
          %s309 = sand.u32 %s147, 1
          %s310 = smul.addr %s309, 256
          %s311 = scalar_lea.vmem [#allocation11], %s310
          %s312 = smul.u32 16, %s29
          %s314 = ssub.s32 4096, 4096
          %315 = vsyncadd %s308, %s314
          %s316 = smul.addr %s312, 2
          %s317 = smul.addr %s316, 128
          %s318 = scalar_lea.hbm %s4, %s317
          %s319 = sshll.u32 %s311, 4
          %s320 = int_to_ptr.vmem [resolvable:$true] %s319
          %325 = dma.hbm_to_vmem [thread:$0]  %s318, 4096, %s320, %s308, 256, 256, 16
        $region36: #{tpu_custom_call.1} parent=27 // pred_fallthru
          _
        // Predicated region
        $region37: #{tpu_custom_call.1} parent=27 // pred_check
          %p326 = pneg %p183
        $region38: #{tpu_custom_call.1} parent=27 // pred_check_branch
          %328 = sbr.rel (%p326) target = $region40
        $region39: #{tpu_custom_call.1} parent=27 // pred_region
          %s329 = sand.u32 %s173, 1
          %s330 = scalar_lea.sflag [#allocation13], %s329
          %s331 = sand.u32 %s173, 1
          %s332 = smul.addr %s331, 128
          %s333 = scalar_lea.vmem [#allocation12], %s332
          %s335 = ssub.s32 2048, 2048
          %336 = vsyncadd %s330, %s335
          %s337 = smul.addr %s29, 128
          %s338 = scalar_lea.hbm %s5, %s337
          %s339 = sshll.u32 %s333, 4
          %s340 = int_to_ptr.vmem [resolvable:$true] %s339
          %345 = dma.hbm_to_vmem [thread:$0]  %s338, 2048, %s340, %s330, 256, 128, 8
        $region40: #{tpu_custom_call.1} parent=27 // pred_fallthru
          _
      $region28: #{tpu_custom_call.1} parent=5 // pred_fallthru
        _
      %p346 = scmp.le.s32.totalorder 1, %s21
      %p347 = scmp.lt.s32.totalorder %s21, 3
      %p348 = pnand %p346, %p347
      %p349 = pneg %p348
      // Predicated region
      $region41: #{tpu_custom_call.1} parent=5 // pred_check
        _
      $region42: #{tpu_custom_call.1} parent=5 // pred_check_branch
        %351 = sbr.rel (%p348) target = $region44
      $region43: #{tpu_custom_call.1} parent=5 // pred_region
        %s352 = ssub.s32 %s21, 1
        // Predicated region
        $region45: #{tpu_custom_call.1} parent=43 // pred_check
          %p353 = pneg %p59
        $region46: #{tpu_custom_call.1} parent=43 // pred_check_branch
          %355 = sbr.rel (%p353) target = $region48
        $region47: #{tpu_custom_call.1} parent=43 // pred_region
          %356 = dma.done [#allocation4], 256
        $region48: #{tpu_custom_call.1} parent=43 // pred_fallthru
          _
        // Predicated region
        $region49: #{tpu_custom_call.1} parent=43 // pred_check
          %p357 = pneg %p85
        $region50: #{tpu_custom_call.1} parent=43 // pred_check_branch
          %359 = sbr.rel (%p357) target = $region52
        $region51: #{tpu_custom_call.1} parent=43 // pred_region
          %360 = dma.done [#allocation7], 256
        $region52: #{tpu_custom_call.1} parent=43 // pred_fallthru
          _
        // Predicated region
        $region53: #{tpu_custom_call.1} parent=43 // pred_check
          %p361 = pneg %p111
        $region54: #{tpu_custom_call.1} parent=43 // pred_check_branch
          %363 = sbr.rel (%p361) target = $region56
        $region55: #{tpu_custom_call.1} parent=43 // pred_region
          %364 = dma.done [#allocation7], 256
        $region56: #{tpu_custom_call.1} parent=43 // pred_fallthru
          _
        %s365 = sand.u32 %s26, 1
        %s366 = scalar_lea.sflag [#allocation10], %s365
        %s367 = sand.u32 %s124, 1
        %s368 = smul.addr %s367, 256
        %s369 = scalar_lea.vmem [#allocation9], %s368
        // Predicated region
        $region57: #{tpu_custom_call.1} parent=43 // pred_check
          %p370 = pneg %p137
        $region58: #{tpu_custom_call.1} parent=43 // pred_check_branch
          %372 = sbr.rel (%p370) target = $region60
        $region59: #{tpu_custom_call.1} parent=43 // pred_region
          %373 = dma.done %s366, 4096
        $region60: #{tpu_custom_call.1} parent=43 // pred_fallthru
          _
        %s374 = sand.u32 %s26, 1
        %s375 = scalar_lea.sflag [#allocation10], %s374
        %s376 = sand.u32 %s150, 1
        %s377 = smul.addr %s376, 256
        %s378 = scalar_lea.vmem [#allocation11], %s377
        // Predicated region
        $region61: #{tpu_custom_call.1} parent=43 // pred_check
          %p379 = pneg %p163
        $region62: #{tpu_custom_call.1} parent=43 // pred_check_branch
          %381 = sbr.rel (%p379) target = $region64
        $region63: #{tpu_custom_call.1} parent=43 // pred_region
          %382 = dma.done %s375, 4096
        $region64: #{tpu_custom_call.1} parent=43 // pred_fallthru
          _
        %s383 = sand.u32 %s176, 1
        %s384 = scalar_lea.sflag [#allocation13], %s383
        %s385 = sand.u32 %s176, 1
        %s386 = smul.addr %s385, 128
        %s387 = scalar_lea.vmem [#allocation12], %s386
        // Predicated region
        $region65: #{tpu_custom_call.1} parent=43 // pred_check
          %p388 = pneg %p189
        $region66: #{tpu_custom_call.1} parent=43 // pred_check_branch
          %390 = sbr.rel (%p388) target = $region68
        $region67: #{tpu_custom_call.1} parent=43 // pred_region
          %391 = dma.done %s384, 2048
        $region68: #{tpu_custom_call.1} parent=43 // pred_fallthru
          _
        %p392 = pneg %p59
        %p393 = pneg %p56
        %p394 = pneg %p85
        %p395 = pneg %p82
        %p396 = pneg %p111
        %p397 = pneg %p108
        %s398 = sand.u32 %s26, 1
        %s399 = scalar_lea.sflag [#allocation10], %s398
        %s400 = sand.u32 %s124, 1
        %s401 = smul.addr %s400, 256
        %s402 = scalar_lea.vmem [#allocation9], %s401
        %p403 = pneg %p137
        %p404 = pneg %p134
        %s405 = sand.u32 %s26, 1
        %s406 = scalar_lea.sflag [#allocation10], %s405
        %s407 = sand.u32 %s150, 1
        %s408 = smul.addr %s407, 256
        %s409 = scalar_lea.vmem [#allocation11], %s408
        %p410 = pneg %p163
        %p411 = pneg %p160
        %s412 = sand.u32 %s176, 1
        %s413 = scalar_lea.sflag [#allocation13], %s412
        %s414 = sand.u32 %s176, 1
        %s415 = smul.addr %s414, 128
        %s416 = scalar_lea.vmem [#allocation12], %s415
        %p417 = pneg %p189
        %p418 = pneg %p186
        %p419 = pneg %p215
        %p420 = pneg %p212
        %s421 = smul.u32 2, %s30
        %s422 = smul.u32 2, %s30
        %s423 = smul.u32 2, %s30
        %s424 = smul.u32 16, %s31
        %s425 = smul.u32 16, %s31
        %s426 = smul.u32 2, %s30
        %p427 = scmp.eq.s32.totalorder %s31, 0
        // Predicated region
        $region69: #{tpu_custom_call.1} parent=43 // pred_check
          %p428 = pneg %p427
        $region70: #{tpu_custom_call.1} parent=43 // pred_check_branch
          %430 = sbr.rel (%p428) target = $region72
        $region71: #{tpu_custom_call.1} parent=43 // pred_region
          %431 = vst [vmem:[#allocation2] sm:$0xff] 0.0
          %432 = vst [vmem:[#allocation2 + $0x8] sm:$0xff] 0.0
        $region72: #{tpu_custom_call.1} parent=43 // pred_fallthru
          _
        %v433 = vld [vmem:[#allocation3] sm:$0xff]
        %v434 = vld [vmem:[#allocation3 + $0x8] sm:$0xff]
        %v435 = vld [vmem:[#allocation6] sm:$0xff]
        %v436 = vld [vmem:[#allocation6 + $0x8] sm:$0xff]
        %v437 = vld [vmem:[#allocation8] sm:$0xff]
        %v438 = vld [vmem:[#allocation8 + $0x8] sm:$0xff]
        %v439 = vld [vmem:[%s369] sm:$0xff]
        %v440 = vld [vmem:[%s369 + $0x10] sm:$0xff]
        %v441 = vld [vmem:[%s369 + $0x20] sm:$0xff]
        %v442 = vld [vmem:[%s369 + $0x30] sm:$0xff]
        %v443 = vld [vmem:[%s369 + $0x40] sm:$0xff]
        %v444 = vld [vmem:[%s369 + $0x50] sm:$0xff]
        %v445 = vld [vmem:[%s369 + $0x60] sm:$0xff]
        %v446 = vld [vmem:[%s369 + $0x70] sm:$0xff]
        %v447 = vld [vmem:[%s369 + $0x80] sm:$0xff]
        %v448 = vld [vmem:[%s369 + $0x90] sm:$0xff]
        %v449 = vld [vmem:[%s369 + $0xa0] sm:$0xff]
        %v450 = vld [vmem:[%s369 + $0xb0] sm:$0xff]
        %v451 = vld [vmem:[%s369 + $0xc0] sm:$0xff]
        %v452 = vld [vmem:[%s369 + $0xd0] sm:$0xff]
        %v453 = vld [vmem:[%s369 + $0xe0] sm:$0xff]
        %v454 = vld [vmem:[%s369 + $0xf0] sm:$0xff]
        %v455 = vld [vmem:[%s369 + $0x8] sm:$0xff]
        %v456 = vld [vmem:[%s369 + $0x18] sm:$0xff]
        %v457 = vld [vmem:[%s369 + $0x28] sm:$0xff]
        %v458 = vld [vmem:[%s369 + $0x38] sm:$0xff]
        %v459 = vld [vmem:[%s369 + $0x48] sm:$0xff]
        %v460 = vld [vmem:[%s369 + $0x58] sm:$0xff]
        %v461 = vld [vmem:[%s369 + $0x68] sm:$0xff]
        %v462 = vld [vmem:[%s369 + $0x78] sm:$0xff]
        %v463 = vld [vmem:[%s369 + $0x88] sm:$0xff]
        %v464 = vld [vmem:[%s369 + $0x98] sm:$0xff]
        %v465 = vld [vmem:[%s369 + $0xa8] sm:$0xff]
        %v466 = vld [vmem:[%s369 + $0xb8] sm:$0xff]
        %v467 = vld [vmem:[%s369 + $0xc8] sm:$0xff]
        %v468 = vld [vmem:[%s369 + $0xd8] sm:$0xff]
        %v469 = vld [vmem:[%s369 + $0xe8] sm:$0xff]
        %v470 = vld [vmem:[%s369 + $0xf8] sm:$0xff]
        %471 = vmatprep.subr.mxu0 0.0
        %472 = vmatpush1.xpose.msra.mxu0 %v455
        %473 = vmatprep.subr.mxu0 0.0
        %474 = vmatpush1.xpose.msra.mxu0 %v456
        %475 = vmatprep.subr.mxu0 0.0
        %476 = vmatpush1.xpose.msra.mxu0 %v457
        %477 = vmatprep.subr.mxu0 0.0
        %478 = vmatpush1.xpose.msra.mxu0 %v458
        %479 = vmatprep.subr.mxu0 0.0
        %480 = vmatpush1.xpose.msra.mxu0 %v459
        %481 = vmatprep.subr.mxu0 0.0
        %482 = vmatpush1.xpose.msra.mxu0 %v460
        %483 = vmatprep.subr.mxu0 0.0
        %484 = vmatpush1.xpose.msra.mxu0 %v461
        %485 = vmatprep.subr.mxu0 0.0
        %486 = vmatpush1.xpose.msra.mxu0 %v462
        %487 = vmatprep.subr.mxu0 0.0
        %488 = vmatpush1.xpose.msra.mxu0 %v463
        %489 = vmatprep.subr.mxu0 0.0
        %490 = vmatpush1.xpose.msra.mxu0 %v464
        %491 = vmatprep.subr.mxu0 0.0
        %492 = vmatpush1.xpose.msra.mxu0 %v465
        %493 = vmatprep.subr.mxu0 0.0
        %494 = vmatpush1.xpose.msra.mxu0 %v466
        %495 = vmatprep.subr.mxu0 0.0
        %496 = vmatpush1.xpose.msra.mxu0 %v467
        %497 = vmatprep.subr.mxu0 0.0
        %498 = vmatpush1.xpose.msra.mxu0 %v468
        %499 = vmatprep.subr.mxu0 0.0
        %500 = vmatpush1.xpose.msra.mxu0 %v469
        %501 = vmatprep.subr.mxu0 0.0
        %502 = vmatpush1.xpose.msra.mxu0 %v470
        %503 = vmatprep.subr.mxu0 0.0
        %504 = vmatpush1.xpose.msra.mxu0 0.0
        %505 = vmatprep.subr.mxu0 0.0
        %506 = vmatpush1.xpose.msra.mxu0 0.0
        %507 = vmatprep.subr.mxu0 0.0
        %508 = vmatpush1.xpose.msra.mxu0 0.0
        %509 = vmatprep.subr.mxu0 0.0
        %510 = vmatpush1.xpose.msra.mxu0 0.0
        %511 = vmatprep.subr.mxu0 0.0
        %512 = vmatpush1.xpose.msra.mxu0 0.0
        %513 = vmatprep.subr.mxu0 0.0
        %514 = vmatpush1.xpose.msra.mxu0 0.0
        %515 = vmatprep.subr.mxu0 0.0
        %516 = vmatpush1.xpose.msra.mxu0 0.0
        %517 = vmatprep.subr.mxu0 0.0
        %518 = vmatpush1.xpose.msra.mxu0 0.0
        %519 = vmatprep.subr.mxu0 0.0
        %520 = vmatpush1.xpose.msra.mxu0 0.0
        %521 = vmatprep.subr.mxu0 0.0
        %522 = vmatpush1.xpose.msra.mxu0 0.0
        %523 = vmatprep.subr.mxu0 0.0
        %524 = vmatpush1.xpose.msra.mxu0 0.0
        %525 = vmatprep.subr.mxu0 0.0
        %526 = vmatpush1.xpose.msra.mxu0 0.0
        %527 = vmatprep.subr.mxu0 0.0
        %528 = vmatpush1.xpose.msra.mxu0 0.0
        %529 = vmatprep.subr.mxu0 0.0
        %530 = vmatpush1.xpose.msra.mxu0 0.0
        %531 = vmatprep.subr.mxu0 0.0
        %532 = vmatpush1.xpose.msra.mxu0 0.0
        %533 = vmatprep.subr.mxu0 0.0
        %534 = vmatpush1.xpose.msra.mxu0 0.0
        %535 = vmatprep.mubr.f32.mxu0 0.0
        %536 = vmatmul.mubr.f32.gmra.mrb[0].mxu0 %v435
        %v537 = vpop.f32.mrb[0].mxu0
        %v538 = vadd.f32 0.0, %v537
        %v539 = vpop.f32.mrb[0].mxu0
        %540 = vmatprep.mubr.f32.mxu0 0.0
        %541 = vmatmul.mubr.f32.gmra.mrb[0].mxu0 %v436
        %v542 = vpop.f32.mrb[0].mxu0
        %v543 = vadd.f32 0.0, %v542
        %v544 = vpop.f32.mrb[0].mxu0
        %545 = vdwg.mxu0
        %546 = vmatprep.subr.mxu0 0.0
        %547 = vmatpush1.xpose.msra.mxu0 %v439
        %548 = vmatprep.subr.mxu0 0.0
        %549 = vmatpush1.xpose.msra.mxu0 %v440
        %550 = vmatprep.subr.mxu0 0.0
        %551 = vmatpush1.xpose.msra.mxu0 %v441
        %552 = vmatprep.subr.mxu0 0.0
        %553 = vmatpush1.xpose.msra.mxu0 %v442
        %554 = vmatprep.subr.mxu0 0.0
        %555 = vmatpush1.xpose.msra.mxu0 %v443
        %556 = vmatprep.subr.mxu0 0.0
        %557 = vmatpush1.xpose.msra.mxu0 %v444
        %558 = vmatprep.subr.mxu0 0.0
        %559 = vmatpush1.xpose.msra.mxu0 %v445
        %560 = vmatprep.subr.mxu0 0.0
        %561 = vmatpush1.xpose.msra.mxu0 %v446
        %562 = vmatprep.subr.mxu0 0.0
        %563 = vmatpush1.xpose.msra.mxu0 %v447
        %564 = vmatprep.subr.mxu0 0.0
        %565 = vmatpush1.xpose.msra.mxu0 %v448
        %566 = vmatprep.subr.mxu0 0.0
        %567 = vmatpush1.xpose.msra.mxu0 %v449
        %568 = vmatprep.subr.mxu0 0.0
        %569 = vmatpush1.xpose.msra.mxu0 %v450
        %570 = vmatprep.subr.mxu0 0.0
        %571 = vmatpush1.xpose.msra.mxu0 %v451
        %572 = vmatprep.subr.mxu0 0.0
        %573 = vmatpush1.xpose.msra.mxu0 %v452
        %574 = vmatprep.subr.mxu0 0.0
        %575 = vmatpush1.xpose.msra.mxu0 %v453
        %576 = vmatprep.subr.mxu0 0.0
        %577 = vmatpush1.xpose.msra.mxu0 %v454
        %578 = vmatprep.subr.mxu0 0.0
        %579 = vmatpush1.xpose.msra.mxu0 0.0
        %580 = vmatprep.subr.mxu0 0.0
        %581 = vmatpush1.xpose.msra.mxu0 0.0
        %582 = vmatprep.subr.mxu0 0.0
        %583 = vmatpush1.xpose.msra.mxu0 0.0
        %584 = vmatprep.subr.mxu0 0.0
        %585 = vmatpush1.xpose.msra.mxu0 0.0
        %586 = vmatprep.subr.mxu0 0.0
        %587 = vmatpush1.xpose.msra.mxu0 0.0
        %588 = vmatprep.subr.mxu0 0.0
        %589 = vmatpush1.xpose.msra.mxu0 0.0
        %590 = vmatprep.subr.mxu0 0.0
        %591 = vmatpush1.xpose.msra.mxu0 0.0
        %592 = vmatprep.subr.mxu0 0.0
        %593 = vmatpush1.xpose.msra.mxu0 0.0
        %594 = vmatprep.subr.mxu0 0.0
        %595 = vmatpush1.xpose.msra.mxu0 0.0
        %596 = vmatprep.subr.mxu0 0.0
        %597 = vmatpush1.xpose.msra.mxu0 0.0
        %598 = vmatprep.subr.mxu0 0.0
        %599 = vmatpush1.xpose.msra.mxu0 0.0
        %600 = vmatprep.subr.mxu0 0.0
        %601 = vmatpush1.xpose.msra.mxu0 0.0
        %602 = vmatprep.subr.mxu0 0.0
        %603 = vmatpush1.xpose.msra.mxu0 0.0
        %604 = vmatprep.subr.mxu0 0.0
        %605 = vmatpush1.xpose.msra.mxu0 0.0
        %606 = vmatprep.subr.mxu0 0.0
        %607 = vmatpush1.xpose.msra.mxu0 0.0
        %608 = vmatprep.subr.mxu0 0.0
        %609 = vmatpush1.xpose.msra.mxu0 0.0
        %610 = vmatprep.mubr.f32.mxu0 0.0
        %611 = vmatmul.mubr.f32.gmra.mrb[0].mxu0 %v433
        %v612 = vpop.f32.mrb[0].mxu0
        %v613 = vadd.f32 %v538, %v612
        %v614 = vpop.f32.mrb[0].mxu0
        %615 = vmatprep.mubr.f32.mxu0 0.0
        %616 = vmatmul.mubr.f32.gmra.mrb[0].mxu0 %v434
        %v617 = vpop.f32.mrb[0].mxu0
        %v618 = vadd.f32 %v543, %v617
        %v619 = vpop.f32.mrb[0].mxu0
        %620 = vdwg.mxu0
        %v621 = vld [vmem:[%s378] sm:$0xff]
        %v622 = vld [vmem:[%s378 + $0x10] sm:$0xff]
        %v623 = vld [vmem:[%s378 + $0x20] sm:$0xff]
        %v624 = vld [vmem:[%s378 + $0x30] sm:$0xff]
        %v625 = vld [vmem:[%s378 + $0x40] sm:$0xff]
        %v626 = vld [vmem:[%s378 + $0x50] sm:$0xff]
        %v627 = vld [vmem:[%s378 + $0x60] sm:$0xff]
        %v628 = vld [vmem:[%s378 + $0x70] sm:$0xff]
        %v629 = vld [vmem:[%s378 + $0x80] sm:$0xff]
        %v630 = vld [vmem:[%s378 + $0x90] sm:$0xff]
        %v631 = vld [vmem:[%s378 + $0xa0] sm:$0xff]
        %v632 = vld [vmem:[%s378 + $0xb0] sm:$0xff]
        %v633 = vld [vmem:[%s378 + $0xc0] sm:$0xff]
        %v634 = vld [vmem:[%s378 + $0xd0] sm:$0xff]
        %v635 = vld [vmem:[%s378 + $0xe0] sm:$0xff]
        %v636 = vld [vmem:[%s378 + $0xf0] sm:$0xff]
        %v637 = vld [vmem:[%s378 + $0x8] sm:$0xff]
        %v638 = vld [vmem:[%s378 + $0x18] sm:$0xff]
        %v639 = vld [vmem:[%s378 + $0x28] sm:$0xff]
        %v640 = vld [vmem:[%s378 + $0x38] sm:$0xff]
        %v641 = vld [vmem:[%s378 + $0x48] sm:$0xff]
        %v642 = vld [vmem:[%s378 + $0x58] sm:$0xff]
        %v643 = vld [vmem:[%s378 + $0x68] sm:$0xff]
        %v644 = vld [vmem:[%s378 + $0x78] sm:$0xff]
        %v645 = vld [vmem:[%s378 + $0x88] sm:$0xff]
        %v646 = vld [vmem:[%s378 + $0x98] sm:$0xff]
        %v647 = vld [vmem:[%s378 + $0xa8] sm:$0xff]
        %v648 = vld [vmem:[%s378 + $0xb8] sm:$0xff]
        %v649 = vld [vmem:[%s378 + $0xc8] sm:$0xff]
        %v650 = vld [vmem:[%s378 + $0xd8] sm:$0xff]
        %v651 = vld [vmem:[%s378 + $0xe8] sm:$0xff]
        %v652 = vld [vmem:[%s378 + $0xf8] sm:$0xff]
        %653 = vmatprep.subr.mxu0 0.0
        %654 = vmatpush1.xpose.msra.mxu0 %v637
        %655 = vmatprep.subr.mxu0 0.0
        %656 = vmatpush1.xpose.msra.mxu0 %v638
        %657 = vmatprep.subr.mxu0 0.0
        %658 = vmatpush1.xpose.msra.mxu0 %v639
        %659 = vmatprep.subr.mxu0 0.0
        %660 = vmatpush1.xpose.msra.mxu0 %v640
        %661 = vmatprep.subr.mxu0 0.0
        %662 = vmatpush1.xpose.msra.mxu0 %v641
        %663 = vmatprep.subr.mxu0 0.0
        %664 = vmatpush1.xpose.msra.mxu0 %v642
        %665 = vmatprep.subr.mxu0 0.0
        %666 = vmatpush1.xpose.msra.mxu0 %v643
        %667 = vmatprep.subr.mxu0 0.0
        %668 = vmatpush1.xpose.msra.mxu0 %v644
        %669 = vmatprep.subr.mxu0 0.0
        %670 = vmatpush1.xpose.msra.mxu0 %v645
        %671 = vmatprep.subr.mxu0 0.0
        %672 = vmatpush1.xpose.msra.mxu0 %v646
        %673 = vmatprep.subr.mxu0 0.0
        %674 = vmatpush1.xpose.msra.mxu0 %v647
        %675 = vmatprep.subr.mxu0 0.0
        %676 = vmatpush1.xpose.msra.mxu0 %v648
        %677 = vmatprep.subr.mxu0 0.0
        %678 = vmatpush1.xpose.msra.mxu0 %v649
        %679 = vmatprep.subr.mxu0 0.0
        %680 = vmatpush1.xpose.msra.mxu0 %v650
        %681 = vmatprep.subr.mxu0 0.0
        %682 = vmatpush1.xpose.msra.mxu0 %v651
        %683 = vmatprep.subr.mxu0 0.0
        %684 = vmatpush1.xpose.msra.mxu0 %v652
        %685 = vmatprep.subr.mxu0 0.0
        %686 = vmatpush1.xpose.msra.mxu0 0.0
        %687 = vmatprep.subr.mxu0 0.0
        %688 = vmatpush1.xpose.msra.mxu0 0.0
        %689 = vmatprep.subr.mxu0 0.0
        %690 = vmatpush1.xpose.msra.mxu0 0.0
        %691 = vmatprep.subr.mxu0 0.0
        %692 = vmatpush1.xpose.msra.mxu0 0.0
        %693 = vmatprep.subr.mxu0 0.0
        %694 = vmatpush1.xpose.msra.mxu0 0.0
        %695 = vmatprep.subr.mxu0 0.0
        %696 = vmatpush1.xpose.msra.mxu0 0.0
        %697 = vmatprep.subr.mxu0 0.0
        %698 = vmatpush1.xpose.msra.mxu0 0.0
        %699 = vmatprep.subr.mxu0 0.0
        %700 = vmatpush1.xpose.msra.mxu0 0.0
        %701 = vmatprep.subr.mxu0 0.0
        %702 = vmatpush1.xpose.msra.mxu0 0.0
        %703 = vmatprep.subr.mxu0 0.0
        %704 = vmatpush1.xpose.msra.mxu0 0.0
        %705 = vmatprep.subr.mxu0 0.0
        %706 = vmatpush1.xpose.msra.mxu0 0.0
        %707 = vmatprep.subr.mxu0 0.0
        %708 = vmatpush1.xpose.msra.mxu0 0.0
        %709 = vmatprep.subr.mxu0 0.0
        %710 = vmatpush1.xpose.msra.mxu0 0.0
        %711 = vmatprep.subr.mxu0 0.0
        %712 = vmatpush1.xpose.msra.mxu0 0.0
        %713 = vmatprep.subr.mxu0 0.0
        %714 = vmatpush1.xpose.msra.mxu0 0.0
        %715 = vmatprep.subr.mxu0 0.0
        %716 = vmatpush1.xpose.msra.mxu0 0.0
        %717 = vmatprep.mubr.f32.mxu0 0.0
        %718 = vmatmul.mubr.f32.gmra.mrb[0].mxu0 %v437
        %v719 = vpop.f32.mrb[0].mxu0
        %v720 = vadd.f32 0.0, %v719
        %v721 = vpop.f32.mrb[0].mxu0
        %722 = vmatprep.mubr.f32.mxu0 0.0
        %723 = vmatmul.mubr.f32.gmra.mrb[0].mxu0 %v438
        %v724 = vpop.f32.mrb[0].mxu0
        %v725 = vadd.f32 0.0, %v724
        %v726 = vpop.f32.mrb[0].mxu0
        %727 = vdwg.mxu0
        %728 = vmatprep.subr.mxu0 0.0
        %729 = vmatpush1.xpose.msra.mxu0 %v621
        %730 = vmatprep.subr.mxu0 0.0
        %731 = vmatpush1.xpose.msra.mxu0 %v622
        %732 = vmatprep.subr.mxu0 0.0
        %733 = vmatpush1.xpose.msra.mxu0 %v623
        %734 = vmatprep.subr.mxu0 0.0
        %735 = vmatpush1.xpose.msra.mxu0 %v624
        %736 = vmatprep.subr.mxu0 0.0
        %737 = vmatpush1.xpose.msra.mxu0 %v625
        %738 = vmatprep.subr.mxu0 0.0
        %739 = vmatpush1.xpose.msra.mxu0 %v626
        %740 = vmatprep.subr.mxu0 0.0
        %741 = vmatpush1.xpose.msra.mxu0 %v627
        %742 = vmatprep.subr.mxu0 0.0
        %743 = vmatpush1.xpose.msra.mxu0 %v628
        %744 = vmatprep.subr.mxu0 0.0
        %745 = vmatpush1.xpose.msra.mxu0 %v629
        %746 = vmatprep.subr.mxu0 0.0
        %747 = vmatpush1.xpose.msra.mxu0 %v630
        %748 = vmatprep.subr.mxu0 0.0
        %749 = vmatpush1.xpose.msra.mxu0 %v631
        %750 = vmatprep.subr.mxu0 0.0
        %751 = vmatpush1.xpose.msra.mxu0 %v632
        %752 = vmatprep.subr.mxu0 0.0
        %753 = vmatpush1.xpose.msra.mxu0 %v633
        %754 = vmatprep.subr.mxu0 0.0
        %755 = vmatpush1.xpose.msra.mxu0 %v634
        %756 = vmatprep.subr.mxu0 0.0
        %757 = vmatpush1.xpose.msra.mxu0 %v635
        %758 = vmatprep.subr.mxu0 0.0
        %759 = vmatpush1.xpose.msra.mxu0 %v636
        %760 = vmatprep.subr.mxu0 0.0
        %761 = vmatpush1.xpose.msra.mxu0 0.0
        %762 = vmatprep.subr.mxu0 0.0
        %763 = vmatpush1.xpose.msra.mxu0 0.0
        %764 = vmatprep.subr.mxu0 0.0
        %765 = vmatpush1.xpose.msra.mxu0 0.0
        %766 = vmatprep.subr.mxu0 0.0
        %767 = vmatpush1.xpose.msra.mxu0 0.0
        %768 = vmatprep.subr.mxu0 0.0
        %769 = vmatpush1.xpose.msra.mxu0 0.0
        %770 = vmatprep.subr.mxu0 0.0
        %771 = vmatpush1.xpose.msra.mxu0 0.0
        %772 = vmatprep.subr.mxu0 0.0
        %773 = vmatpush1.xpose.msra.mxu0 0.0
        %774 = vmatprep.subr.mxu0 0.0
        %775 = vmatpush1.xpose.msra.mxu0 0.0
        %776 = vmatprep.subr.mxu0 0.0
        %777 = vmatpush1.xpose.msra.mxu0 0.0
        %778 = vmatprep.subr.mxu0 0.0
        %779 = vmatpush1.xpose.msra.mxu0 0.0
        %780 = vmatprep.subr.mxu0 0.0
        %781 = vmatpush1.xpose.msra.mxu0 0.0
        %782 = vmatprep.subr.mxu0 0.0
        %783 = vmatpush1.xpose.msra.mxu0 0.0
        %784 = vmatprep.subr.mxu0 0.0
        %785 = vmatpush1.xpose.msra.mxu0 0.0
        %786 = vmatprep.subr.mxu0 0.0
        %787 = vmatpush1.xpose.msra.mxu0 0.0
        %788 = vmatprep.subr.mxu0 0.0
        %789 = vmatpush1.xpose.msra.mxu0 0.0
        %790 = vmatprep.subr.mxu0 0.0
        %791 = vmatpush1.xpose.msra.mxu0 0.0
        %792 = vmatprep.mubr.f32.mxu0 0.0
        %793 = vmatmul.mubr.f32.gmra.mrb[0].mxu0 %v433
        %v794 = vpop.f32.mrb[0].mxu0
        %v795 = vadd.f32 %v720, %v794
        %v796 = vpop.f32.mrb[0].mxu0
        %797 = vmatprep.mubr.f32.mxu0 0.0
        %798 = vmatmul.mubr.f32.gmra.mrb[0].mxu0 %v434
        %v799 = vpop.f32.mrb[0].mxu0
        %v800 = vadd.f32 %v725, %v799
        %v801 = vpop.f32.mrb[0].mxu0
        %802 = vdwg.mxu0
        %v803 = vxor.u32 %v613, 2147483648
        %v804 = vxor.u32 %v618, 2147483648
        %v805 = vmul.f32 %v803, 1.442695
        %v806 = vpow.pop %v805
        %v807 = vmul.f32 %v804, 1.442695
        %v808 = vpow.pop %v807
        %v809 = vadd.f32 %v806, 1.0
        %v810 = vadd.f32 %v808, 1.0
        %v811 = vrcp.pop %v809
        %v812 = vmul.f32 1.0, %v811
        %v813 = vrcp.pop %v810
        %v814 = vmul.f32 1.0, %v813
        %v815 = vmul.f32 %v613, %v812
        %v816 = vmul.f32 %v618, %v814
        %v817 = vmul.f32 %v815, %v795
        %v818 = vmul.f32 %v816, %v800
        %v819 = vld [vmem:[#allocation2] sm:$0xff]
        %v820 = vld [vmem:[#allocation2 + $0x8] sm:$0xff]
        %v821 = vld [vmem:[%s387] sm:$0xff]
        %v822 = vld [vmem:[%s387 + $0x8] sm:$0xff]
        %v823 = vld [vmem:[%s387 + $0x10] sm:$0xff]
        %v824 = vld [vmem:[%s387 + $0x18] sm:$0xff]
        %v825 = vld [vmem:[%s387 + $0x20] sm:$0xff]
        %v826 = vld [vmem:[%s387 + $0x28] sm:$0xff]
        %v827 = vld [vmem:[%s387 + $0x30] sm:$0xff]
        %v828 = vld [vmem:[%s387 + $0x38] sm:$0xff]
        %v829 = vld [vmem:[%s387 + $0x40] sm:$0xff]
        %v830 = vld [vmem:[%s387 + $0x48] sm:$0xff]
        %v831 = vld [vmem:[%s387 + $0x50] sm:$0xff]
        %v832 = vld [vmem:[%s387 + $0x58] sm:$0xff]
        %v833 = vld [vmem:[%s387 + $0x60] sm:$0xff]
        %v834 = vld [vmem:[%s387 + $0x68] sm:$0xff]
        %v835 = vld [vmem:[%s387 + $0x70] sm:$0xff]
        %v836 = vld [vmem:[%s387 + $0x78] sm:$0xff]
        %837 = vmatprep.subr.mxu0 0.0
        %838 = vmatpush1.xpose.msra.mxu0 %v821
        %839 = vmatprep.subr.mxu0 0.0
        %840 = vmatpush1.xpose.msra.mxu0 %v822
        %841 = vmatprep.subr.mxu0 0.0
        %842 = vmatpush1.xpose.msra.mxu0 %v823
        %843 = vmatprep.subr.mxu0 0.0
        %844 = vmatpush1.xpose.msra.mxu0 %v824
        %845 = vmatprep.subr.mxu0 0.0
        %846 = vmatpush1.xpose.msra.mxu0 %v825
        %847 = vmatprep.subr.mxu0 0.0
        %848 = vmatpush1.xpose.msra.mxu0 %v826
        %849 = vmatprep.subr.mxu0 0.0
        %850 = vmatpush1.xpose.msra.mxu0 %v827
        %851 = vmatprep.subr.mxu0 0.0
        %852 = vmatpush1.xpose.msra.mxu0 %v828
        %853 = vmatprep.subr.mxu0 0.0
        %854 = vmatpush1.xpose.msra.mxu0 %v829
        %855 = vmatprep.subr.mxu0 0.0
        %856 = vmatpush1.xpose.msra.mxu0 %v830
        %857 = vmatprep.subr.mxu0 0.0
        %858 = vmatpush1.xpose.msra.mxu0 %v831
        %859 = vmatprep.subr.mxu0 0.0
        %860 = vmatpush1.xpose.msra.mxu0 %v832
        %861 = vmatprep.subr.mxu0 0.0
        %862 = vmatpush1.xpose.msra.mxu0 %v833
        %863 = vmatprep.subr.mxu0 0.0
        %864 = vmatpush1.xpose.msra.mxu0 %v834
        %865 = vmatprep.subr.mxu0 0.0
        %866 = vmatpush1.xpose.msra.mxu0 %v835
        %867 = vmatprep.subr.mxu0 0.0
        %868 = vmatpush1.xpose.msra.mxu0 %v836
        %869 = vmatprep.subr.mxu0 0.0
        %870 = vmatpush1.xpose.msra.mxu0 0.0
        %871 = vmatprep.subr.mxu0 0.0
        %872 = vmatpush1.xpose.msra.mxu0 0.0
        %873 = vmatprep.subr.mxu0 0.0
        %874 = vmatpush1.xpose.msra.mxu0 0.0
        %875 = vmatprep.subr.mxu0 0.0
        %876 = vmatpush1.xpose.msra.mxu0 0.0
        %877 = vmatprep.subr.mxu0 0.0
        %878 = vmatpush1.xpose.msra.mxu0 0.0
        %879 = vmatprep.subr.mxu0 0.0
        %880 = vmatpush1.xpose.msra.mxu0 0.0
        %881 = vmatprep.subr.mxu0 0.0
        %882 = vmatpush1.xpose.msra.mxu0 0.0
        %883 = vmatprep.subr.mxu0 0.0
        %884 = vmatpush1.xpose.msra.mxu0 0.0
        %885 = vmatprep.subr.mxu0 0.0
        %886 = vmatpush1.xpose.msra.mxu0 0.0
        %887 = vmatprep.subr.mxu0 0.0
        %888 = vmatpush1.xpose.msra.mxu0 0.0
        %889 = vmatprep.subr.mxu0 0.0
        %890 = vmatpush1.xpose.msra.mxu0 0.0
        %891 = vmatprep.subr.mxu0 0.0
        %892 = vmatpush1.xpose.msra.mxu0 0.0
        %893 = vmatprep.subr.mxu0 0.0
        %894 = vmatpush1.xpose.msra.mxu0 0.0
        %895 = vmatprep.subr.mxu0 0.0
        %896 = vmatpush1.xpose.msra.mxu0 0.0
        %897 = vmatprep.subr.mxu0 0.0
        %898 = vmatpush1.xpose.msra.mxu0 0.0
        %899 = vmatprep.subr.mxu0 0.0
        %900 = vmatpush1.xpose.msra.mxu0 0.0
        %901 = vmatprep.mubr.f32.mxu0 0.0
        %902 = vmatmul.mubr.f32.gmra.mrb[0].mxu0 %v817
        %v903 = vpop.f32.mrb[0].mxu0
        %v904 = vadd.f32 0.0, %v903
        %v905 = vpop.f32.mrb[0].mxu0
        %906 = vmatprep.mubr.f32.mxu0 0.0
        %907 = vmatmul.mubr.f32.gmra.mrb[0].mxu0 %v818
        %v908 = vpop.f32.mrb[0].mxu0
        %v909 = vadd.f32 0.0, %v908
        %v910 = vpop.f32.mrb[0].mxu0
        %911 = vdwg.mxu0
        %v912 = vadd.f32 %v819, %v904
        %v913 = vadd.f32 %v820, %v909
        %914 = vst [vmem:[#allocation2] sm:$0xff] %v912
        %915 = vst [vmem:[#allocation2 + $0x8] sm:$0xff] %v913
        %p916 = scmp.eq.s32.totalorder %s31, 1
        // Predicated region
        $region73: #{tpu_custom_call.1} parent=43 // pred_check
          %p917 = pneg %p916
        $region74: #{tpu_custom_call.1} parent=43 // pred_check_branch
          %919 = sbr.rel (%p917) target = $region76
        $region75: #{tpu_custom_call.1} parent=43 // pred_region
          %v920 = vld [vmem:[#allocation2] sm:$0xff]
          %v921 = vld [vmem:[#allocation2 + $0x8] sm:$0xff]
          %922 = vst [vmem:[#allocation14] sm:$0xff] %v920
          %923 = vst [vmem:[#allocation14 + $0x8] sm:$0xff] %v921
        $region76: #{tpu_custom_call.1} parent=43 // pred_fallthru
          _
        // Predicated region
        $region77: #{tpu_custom_call.1} parent=43 // pred_check
          %p924 = pneg %p212
        $region78: #{tpu_custom_call.1} parent=43 // pred_check_branch
          %926 = sbr.rel (%p924) target = $region80
        $region79: #{tpu_custom_call.1} parent=43 // pred_region
          %s927 = smul.u32 2, %s30
          %s929 = ssub.s32 256, 256
          %930 = vsyncadd [#allocation5], %s929
          %s931 = smul.addr %s927, 128
          %s932 = scalar_lea.hbm %s6, %s931
          %s933 = sshll.u32 [#allocation14], 4
          %s934 = int_to_ptr.vmem [resolvable:$true] %s933
          %939 = dma.vmem_to_hbm [thread:$0]  %s934, 256, %s932, [#allocation5], 128, 128, 8
        $region80: #{tpu_custom_call.1} parent=43 // pred_fallthru
          _
        // Predicated region
        $region81: #{tpu_custom_call.1} parent=43 // pred_check
          %p940 = pneg %p212
        $region82: #{tpu_custom_call.1} parent=43 // pred_check_branch
          %942 = sbr.rel (%p940) target = $region84
        $region83: #{tpu_custom_call.1} parent=43 // pred_region
          %943 = dma.done [#allocation5], 256
        $region84: #{tpu_custom_call.1} parent=43 // pred_fallthru
          _
      $region44: #{tpu_custom_call.1} parent=5 // pred_fallthru
        _
      %p944 = scmp.le.s32.totalorder 2, %s21
      // Predicated region
      $region85: #{tpu_custom_call.1} parent=5 // pred_check
        %p945 = pneg %p944
      $region86: #{tpu_custom_call.1} parent=5 // pred_check_branch
        %947 = sbr.rel (%p945) target = $region88
      $region87: #{tpu_custom_call.1} parent=5 // pred_region
        %s948 = ssub.s32 %s21, 2
      $region88: #{tpu_custom_call.1} parent=5 // pred_fallthru
        _
    $region6: #{tpu_custom_call.1} parent=1 // loop_footer
      %s25 = sadd.s32 1, %s21
    $region7: #{tpu_custom_call.1} parent=1 // loop_footer_branch
      %20 = sbr.rel target = $region3
    $region8: #{tpu_custom_call.1} parent=1 // loop_exit
      _
    %949 = vsyncpa [#allocation4], 1
    %s950 = scalar_lea.sflag [#allocation4], 1
    %951 = vsyncpa %s950, 1
    %952 = vsyncpa [#allocation7], 1
    %953 = vsyncpa [#allocation10], 1
    %s954 = scalar_lea.sflag [#allocation10], 1
    %955 = vsyncpa %s954, 1
    %956 = vsyncpa [#allocation13], 1
    %s957 = scalar_lea.sflag [#allocation13], 1
    %958 = vsyncpa %s957, 1
    %959 = vsyncpa [#allocation5], 1
    %s960 = scalar_lea.sflag [#allocation5], 1
    %961 = vsyncpa %s960, 1

</llo_original>
